<compile_context>
chip_gen: v6e
topology: v6e:2x2x1
jax: 0.10.0
libtpu: 0.0.40
codegen_flags: <defaults>
</compile_context>

<pallas_src>
import functools

import jax
import jax.numpy as jnp
from jax import lax
from jax.experimental import pallas as pl
from jax.experimental.pallas import tpu as pltpu


# ---------------------------------------------------------------------------
# Kernel
# ---------------------------------------------------------------------------
def conv1d_block_kernel(x_ref, w_ref, b_ref, gamma_ref, beta_ref,
                        g_ref, gt_ref, o_ref, *, n_groups, eps, K):
    # x_ref:     (Bt, Cin, L)       NCL input tile (transposed to NLC in VMEM)
    # w_ref:     (K*Cin, Cout)      conv taps flattened, row = k*Cin + ci
    # b_ref:     (1, Cout)          conv bias
    # gamma_ref: (1, Cout)          GroupNorm scale
    # beta_ref:  (1, Cout)          GroupNorm shift
    # g_ref:     (Cout, n_groups)   one-hot channel->group (f32)
    # gt_ref:    (n_groups, Cout)   its transpose (f32)
    # o_ref:     (Bt, Lout, Cout)   channels-last, lane-dense output
    Bt, Cin, L = x_ref.shape
    Lout, Cout = o_ref.shape[1], o_ref.shape[2]
    pad = K // 2
    gs = Cout // n_groups

    # NCL -> NLC inside VMEM (cheap XLU transpose; no HBM relayout pass).
    x = jnp.transpose(x_ref[...], (0, 2, 1))              # (Bt, L, Cin), native dtype
    if pad > 0:
        z = jnp.zeros((Bt, pad, Cin), x.dtype)
        xp = jnp.concatenate([z, x, z], axis=1)           # (Bt, L + 2*pad, Cin)
    else:
        xp = x

    # ---- Conv1d on the MXU (f32 accumulation) ----
    if Cin >= 128:
        # Cin alone fills the MXU contraction dim: K accumulated dots, no
        # K-times-larger LHS copy living in VMEM.
        acc = jnp.zeros((Bt * Lout, Cout), jnp.float32)
        for k in range(K):
            lhs = xp[:, k:k + Lout, :].reshape(Bt * Lout, Cin)
            acc = acc + jnp.dot(lhs, w_ref[k * Cin:(k + 1) * Cin, :],
                                preferred_element_type=jnp.float32)
    else:
        # Small Cin: merge all K taps into one deeper contraction.
        taps = [xp[:, k:k + Lout, :] for k in range(K)]
        lhs = jnp.concatenate(taps, axis=-1).reshape(Bt * Lout, K * Cin)
        acc = jnp.dot(lhs, w_ref[...], preferred_element_type=jnp.float32)
    y = (acc + b_ref[...].astype(jnp.float32)).reshape(Bt, Lout, Cout)

    # ---- GroupNorm (fused reduce/broadcast dots, one-pass variance) ----
    G = g_ref[...]                                         # (Cout, n_groups) f32
    Gt = gt_ref[...]                                       # (n_groups, Cout) f32
    inv_n = jnp.float32(1.0 / (gs * Lout))
    sum_c = jnp.sum(y, axis=1)                             # (Bt, Cout)
    sumsq_c = jnp.sum(y * y, axis=1)                       # (Bt, Cout)
    stats_c = jnp.concatenate([sum_c, sumsq_c], axis=0)    # (2*Bt, Cout)
    stats_g = jnp.dot(stats_c, G, preferred_element_type=jnp.float32) * inv_n
    mean_g = stats_g[:Bt]                                  # (Bt, n_groups)
    var_g = stats_g[Bt:] - mean_g * mean_g
    inv_g = lax.rsqrt(var_g + jnp.float32(eps))
    mi_g = jnp.concatenate([mean_g, inv_g], axis=0)        # (2*Bt, n_groups)
    mi_c = jnp.dot(mi_g, Gt, preferred_element_type=jnp.float32)  # (2*Bt, Cout)
    mean_c = mi_c[:Bt][:, None, :]
    inv_c = mi_c[Bt:][:, None, :]
    yn = (y - mean_c) * inv_c
    yn = yn * gamma_ref[...].astype(jnp.float32) + beta_ref[...].astype(jnp.float32)

    # ---- Mish: x * tanh(softplus(x)) = x * (1 - 2/((1+e^x)^2 + 1)) ----
    zc = jnp.minimum(yn, 20.0)                             # clamp: exact in f32 anyway
    e = jnp.exp(zc)
    u = 1.0 + e
    d = u * u + 1.0
    r = pl.reciprocal(d, approx=True)                      # EUP approx recip
    r = r * (2.0 - d * r)                                  # one VPU Newton step
    out = yn - 2.0 * yn * r

    o_ref[...] = out.astype(o_ref.dtype)                   # lane-dense store


# ---------------------------------------------------------------------------
# Tiling / VMEM heuristics
# ---------------------------------------------------------------------------
def _round_up(x, m):
    return ((x + m - 1) // m) * m


def _tile_bytes(shape, dtype):
    """Approx. VMEM footprint of one buffer under (sublane, 128-lane) tiling."""
    itemsize = jnp.dtype(dtype).itemsize
    sub = 8 * max(1, 4 // itemsize)
    if len(shape) < 2:
        n = shape[0] if shape else 1
        return _round_up(n, 128) * itemsize
    lead = 1
    for ddim in shape[:-2]:
        lead *= ddim
    return lead * _round_up(shape[-2], sub) * _round_up(shape[-1], 128) * itemsize


def _estimate_vmem_bytes(bt, L, Lout, Cin, Cout, K, n_groups, dtype):
    pad = K // 2
    b = 0
    b += 2 * _tile_bytes((bt, Cin, L), dtype)             # input block (double-buffered)
    b += 2 * _tile_bytes((bt, Lout, Cout), dtype)         # output block
    b += 2 * _tile_bytes((K * Cin, Cout), dtype)          # resident weight slab
    b += 2 * 3 * _tile_bytes((1, Cout), dtype)            # bias / gamma / beta
    b += 2 * (_tile_bytes((Cout, n_groups), jnp.float32)
              + _tile_bytes((n_groups, Cout), jnp.float32))
    # In-kernel temporaries.
    b += _tile_bytes((bt, L + 2 * pad, Cin), dtype)       # channels-last halo copy
    if Cin < 128:
        b += _tile_bytes((bt * Lout, K * Cin), dtype)     # merged-tap LHS
    b += 4 * _tile_bytes((bt, Lout, Cout), jnp.float32)   # f32 acc / y / yn / out
    return b


def _tpu_info():
    try:
        kind = jax.devices()[0].device_kind.lower()
    except Exception:
        kind = ""
    vmem_phys = (64 << 20) if "v7" in kind else (128 << 20)
    n_tc = 2 if any(t in kind for t in ("v4", "v5p", "v7")) else 1
    return kind, vmem_phys, n_tc


def _pick_bt(B, Lout, n_tc, fits, target_rows=512):
    """Largest batch tile that fits VMEM, targeting ~target_rows MXU rows."""
    bt = min(B, max(1, -(-target_rows // Lout)))
    if n_tc >= 2 and B >= 2:
        bt = min(bt, -(-B // 2))     # keep >= 2 grid steps only on 2-TC chips
    while bt > 1 and not fits(bt):
        bt = max(1, bt // 2)
    return bt


# ---------------------------------------------------------------------------
# Wrapper
# ---------------------------------------------------------------------------
def conv1d_block(x_ncl, weight, bias, gamma, beta, *, n_groups=8, eps=1e-5,
                 max_bt=None):
    """x_ncl: (B, Cin, L); weight: (Cout, Cin, K); bias/gamma/beta: (Cout,).
    Returns (B, Cout, Lout) matching PyTorch Conv1dBlock."""
    B, Cin, L = x_ncl.shape
    Cout, Cin_w, K = weight.shape
    assert Cin_w == Cin
    assert Cout % n_groups == 0, "GroupNorm requires Cout % n_groups == 0"
    pad = K // 2
    Lout = L + 2 * pad - (K - 1)          # matches PyTorch Conv1d(padding=K//2)
    gs = Cout // n_groups

    _, vmem_phys, n_tc = _tpu_info()
    budget = int(vmem_phys * 0.55)

    def fits(bt):
        return _estimate_vmem_bytes(bt, L, Lout, Cin, Cout, K, n_groups,
                                    x_ncl.dtype) <= budget

    Bt = _pick_bt(B, Lout, n_tc, fits)
    if max_bt is not None:
        Bt = max(1, min(Bt, max_bt))
    nb = pl.cdiv(B, Bt)                   # masked tail block for awkward B

    est = _estimate_vmem_bytes(Bt, L, Lout, Cin, Cout, K, n_groups, x_ncl.dtype)
    vmem_limit = int(min(vmem_phys * 0.9, max(2 * est, 64 << 20)))

    # Weight flattened so row index = k*Cin + ci, matching the tap order.
    w2 = jnp.transpose(weight, (2, 1, 0)).reshape(K * Cin, Cout)
    b2 = bias.reshape(1, Cout)
    g2 = gamma.reshape(1, Cout)
    be2 = beta.reshape(1, Cout)
    # One-hot channel->group matrices (constant index_map => DMA'd once).
    ch_group = jnp.arange(Cout, dtype=jnp.int32) // gs
    G = (ch_group[:, None] == jnp.arange(n_groups, dtype=jnp.int32)[None, :]
         ).astype(jnp.float32)                                # (Cout, n_groups)
    GT = G.T                                                  # (n_groups, Cout)

    dt_bytes = jnp.dtype(x_ncl.dtype).itemsize
    cost = pl.CostEstimate(
        flops=2 * B * Lout * K * Cin * Cout + 14 * B * Lout * Cout,
        transcendentals=2 * B * Lout * Cout,
        bytes_accessed=(B * Cin * L + B * Lout * Cout) * dt_bytes
                       + (K * Cin * Cout + 3 * Cout) * dt_bytes
                       + 2 * Cout * n_groups * 4,
    )

    kernel = functools.partial(conv1d_block_kernel,
                               n_groups=n_groups, eps=eps, K=K)
    out_nlc = pl.pallas_call(
        kernel,
        out_shape=jax.ShapeDtypeStruct((B, Lout, Cout), x_ncl.dtype),
        grid_spec=pltpu.PrefetchScalarGridSpec(
            num_scalar_prefetch=0,
            grid=(nb,),
            in_specs=[
                pl.BlockSpec((Bt, Cin, L), lambda b: (b, 0, 0)),
                pl.BlockSpec((K * Cin, Cout), lambda b: (0, 0)),
                pl.BlockSpec((1, Cout), lambda b: (0, 0)),
                pl.BlockSpec((1, Cout), lambda b: (0, 0)),
                pl.BlockSpec((1, Cout), lambda b: (0, 0)),
                pl.BlockSpec((Cout, n_groups), lambda b: (0, 0)),
                pl.BlockSpec((n_groups, Cout), lambda b: (0, 0)),
            ],
            out_specs=pl.BlockSpec((Bt, Lout, Cout), lambda b: (b, 0, 0)),
        ),
        compiler_params=pltpu.CompilerParams(
            dimension_semantics=("parallel",),
            vmem_limit_bytes=vmem_limit),
        cost_estimate=cost,
    )(x_ncl, w2, b2, g2, be2, G, GT)

    # Single boundary relayout back to the module's NCL contract (keep the
    # surrounding network channels-last to skip it entirely).
    return jnp.transpose(out_nlc, (0, 2, 1))               # (B, Cout, Lout)


# ---------------------------------------------------------------------------
# Pure-JAX reference (PyTorch Conv1d -> GroupNorm -> Mish)
# ---------------------------------------------------------------------------
def reference(x_ncl, weight, bias, gamma, beta, *, n_groups=8, eps=1e-5):
    K = weight.shape[-1]
    pad = K // 2
    out = lax.conv_general_dilated(
        x_ncl, weight, window_strides=(1,), padding=[(pad, pad)],
        dimension_numbers=("NCH", "OIH", "NCH"))
    out = out + bias[None, :, None]
    B, C, L = out.shape
    og = out.reshape(B, n_groups, C // n_groups, L)
    mean = og.mean(axis=(2, 3), keepdims=True)
    var = ((og - mean) ** 2).mean(axis=(2, 3), keepdims=True)
    on = ((og - mean) / jnp.sqrt(var + eps)).reshape(B, C, L)
    on = on * gamma[None, :, None] + beta[None, :, None]
    return on * jnp.tanh(jax.nn.softplus(on))


def _run_case(B, C_in, C_out, L, K, n_groups, seed, w_scale, max_bt=None):
    key = jax.random.PRNGKey(seed)
    kx, kw, kb, kg, kbe = jax.random.split(key, 5)
    x = jax.random.normal(kx, (B, C_in, L), dtype=jnp.float32)
    weight = w_scale * jax.random.normal(kw, (C_out, C_in, K), dtype=jnp.float32)
    bias = 0.1 * jax.random.normal(kb, (C_out,), dtype=jnp.float32)
    gamma = 1.0 + 0.1 * jax.random.normal(kg, (C_out,), dtype=jnp.float32)
    beta = 0.1 * jax.random.normal(kbe, (C_out,), dtype=jnp.float32)

    out = conv1d_block(x, weight, bias, gamma, beta, n_groups=n_groups,
                       max_bt=max_bt)
    out = jax.block_until_ready(out)
    ref = reference(x, weight, bias, gamma, beta, n_groups=n_groups)
    assert out.shape == ref.shape, (out.shape, ref.shape)
    err = float(jnp.abs(out - ref).max())
    assert jnp.allclose(out, ref, atol=1e-4, rtol=1e-4), err
    return err


if __name__ == "__main__":
    # Case 1: small shapes implied by the module (merged-tap conv path).
    _run_case(B=2, C_in=4, C_out=16, L=16, K=3, n_groups=8, seed=0, w_scale=0.2)
    # Case 2: Cin >= 128 (K accumulated-dot path) and a batch that does not
    # divide the batch tile (exercises the masked tail block).
    _run_case(B=3, C_in=128, C_out=16, L=16, K=3, n_groups=8, seed=1,
              w_scale=0.05, max_bt=2)
    print("KERNEL_OK")
</pallas_src>

<mosaic_0001>
module attributes {stable_mosaic.version = 11 : i64} {
  func.func @conv1d_block_kernel(%arg0: i32, %arg1: memref<2x4x16xf32, #tpu.memory_space<vmem>>, %arg2: memref<12x16xf32, #tpu.memory_space<vmem>>, %arg3: memref<1x16xf32, #tpu.memory_space<vmem>>, %arg4: memref<1x16xf32, #tpu.memory_space<vmem>>, %arg5: memref<1x16xf32, #tpu.memory_space<vmem>>, %arg6: memref<16x8xf32, #tpu.memory_space<vmem>>, %arg7: memref<8x16xf32, #tpu.memory_space<vmem>>, %arg8: memref<2x16x16xf32, #tpu.memory_space<vmem>>) attributes {dimension_semantics = [#tpu.dimension_semantics<parallel>], iteration_bounds = array<i64: 1>, scalar_prefetch = 0 : i64, scratch_operands = 0 : i64, tpu.core_type = #tpu.core_type<tc>, window_params = [{transform_indices = @transform_0, window_bounds = array<i64: 2, 4, 16>}, {pipeline_mode = #tpu.pipeline_mode<synchronous>, transform_indices = @transform_1, window_bounds = array<i64: 12, 16>}, {pipeline_mode = #tpu.pipeline_mode<synchronous>, transform_indices = @transform_2, window_bounds = array<i64: 1, 16>}, {pipeline_mode = #tpu.pipeline_mode<synchronous>, transform_indices = @transform_3, window_bounds = array<i64: 1, 16>}, {pipeline_mode = #tpu.pipeline_mode<synchronous>, transform_indices = @transform_4, window_bounds = array<i64: 1, 16>}, {pipeline_mode = #tpu.pipeline_mode<synchronous>, transform_indices = @transform_5, window_bounds = array<i64: 16, 8>}, {pipeline_mode = #tpu.pipeline_mode<synchronous>, transform_indices = @transform_6, window_bounds = array<i64: 8, 16>}, {transform_indices = @transform_7, window_bounds = array<i64: 2, 16, 16>}]} {
    %c0 = arith.constant 0 : index
    %c0_0 = arith.constant 0 : index
    %c0_1 = arith.constant 0 : index
    %0 = vector.load %arg1[%c0, %c0_0, %c0_1] : memref<2x4x16xf32, #tpu.memory_space<vmem>>, vector<2x4x16xf32>
    %1 = tpu.transpose %0, [0, 2, 1] : vector<2x4x16xf32> -> vector<2x16x4xf32>
    %cst = arith.constant 0.000000e+00 : f32
    %2 = vector.broadcast %cst : f32 to vector<2x1x4xf32>
    %3 = tpu.concatenate %2, %1, %2 in 1 : vector<2x1x4xf32>, vector<2x16x4xf32>, vector<2x1x4xf32> -> vector<2x18x4xf32>
    %4 = vector.extract_strided_slice %3 {offsets = [0, 0, 0], sizes = [2, 16, 4], strides = [1, 1, 1]} : vector<2x18x4xf32> to vector<2x16x4xf32>
    %5 = vector.extract_strided_slice %3 {offsets = [0, 1, 0], sizes = [2, 16, 4], strides = [1, 1, 1]} : vector<2x18x4xf32> to vector<2x16x4xf32>
    %6 = vector.extract_strided_slice %3 {offsets = [0, 2, 0], sizes = [2, 16, 4], strides = [1, 1, 1]} : vector<2x18x4xf32> to vector<2x16x4xf32>
    %7 = tpu.concatenate %4, %5, %6 in 2 : vector<2x16x4xf32>, vector<2x16x4xf32>, vector<2x16x4xf32> -> vector<2x16x12xf32>
    %8 = vector.shape_cast %7 : vector<2x16x12xf32> to vector<32x12xf32>
    %c0_2 = arith.constant 0 : index
    %c0_3 = arith.constant 0 : index
    %9 = vector.load %arg2[%c0_2, %c0_3] : memref<12x16xf32, #tpu.memory_space<vmem>>, vector<12x16xf32>
    %cst_4 = arith.constant dense<0.000000e+00> : vector<32x16xf32>
    %10 = tpu.matmul %8, %9, %cst_4 {dimension_numbers = #tpu.dot_dimension_numbers<[1], [0], [0], [1], [0, 0, 1, 1], [], []>} : vector<32x12xf32>, vector<12x16xf32>, vector<32x16xf32> -> vector<32x16xf32>
    %c0_5 = arith.constant 0 : index
    %c0_6 = arith.constant 0 : index
    %11 = vector.load %arg3[%c0_5, %c0_6] : memref<1x16xf32, #tpu.memory_space<vmem>>, vector<1x16xf32>
    %12 = vector.broadcast %11 : vector<1x16xf32> to vector<32x16xf32>
    %13 = arith.addf %10, %12 : vector<32x16xf32>
    %14 = vector.shape_cast %13 : vector<32x16xf32> to vector<2x16x16xf32>
    %c0_7 = arith.constant 0 : index
    %c0_8 = arith.constant 0 : index
    %15 = vector.load %arg6[%c0_7, %c0_8] : memref<16x8xf32, #tpu.memory_space<vmem>>, vector<16x8xf32>
    %c0_9 = arith.constant 0 : index
    %c0_10 = arith.constant 0 : index
    %16 = vector.load %arg7[%c0_9, %c0_10] : memref<8x16xf32, #tpu.memory_space<vmem>>, vector<8x16xf32>
    %cst_11 = arith.constant dense<0.000000e+00> : vector<2x16xf32>
    %17 = vector.multi_reduction <add>, %14, %cst_11 [1] : vector<2x16x16xf32> to vector<2x16xf32>
    %18 = arith.mulf %14, %14 : vector<2x16x16xf32>
    %cst_12 = arith.constant dense<0.000000e+00> : vector<2x16xf32>
    %19 = vector.multi_reduction <add>, %18, %cst_12 [1] : vector<2x16x16xf32> to vector<2x16xf32>
    %20 = tpu.concatenate %17, %19 in 0 : vector<2x16xf32>, vector<2x16xf32> -> vector<4x16xf32>
    %cst_13 = arith.constant dense<0.000000e+00> : vector<4x8xf32>
    %21 = tpu.matmul %20, %15, %cst_13 {dimension_numbers = #tpu.dot_dimension_numbers<[1], [0], [0], [1], [0, 0, 1, 1], [], []>} : vector<4x16xf32>, vector<16x8xf32>, vector<4x8xf32> -> vector<4x8xf32>
    %cst_14 = arith.constant 3.125000e-02 : f32
    %22 = vector.broadcast %cst_14 : f32 to vector<4x8xf32>
    %23 = arith.mulf %21, %22 : vector<4x8xf32>
    %24 = vector.extract_strided_slice %23 {offsets = [0, 0], sizes = [2, 8], strides = [1, 1]} : vector<4x8xf32> to vector<2x8xf32>
    %25 = vector.extract_strided_slice %23 {offsets = [2, 0], sizes = [2, 8], strides = [1, 1]} : vector<4x8xf32> to vector<2x8xf32>
    %26 = arith.mulf %24, %24 : vector<2x8xf32>
    %27 = arith.subf %25, %26 : vector<2x8xf32>
    %cst_15 = arith.constant 9.99999974E-6 : f32
    %28 = vector.broadcast %cst_15 : f32 to vector<2x8xf32>
    %29 = arith.addf %27, %28 : vector<2x8xf32>
    %30 = math.rsqrt %29 : vector<2x8xf32>
    %31 = tpu.concatenate %24, %30 in 0 : vector<2x8xf32>, vector<2x8xf32> -> vector<4x8xf32>
    %cst_16 = arith.constant dense<0.000000e+00> : vector<4x16xf32>
    %32 = tpu.matmul %31, %16, %cst_16 {dimension_numbers = #tpu.dot_dimension_numbers<[1], [0], [0], [1], [0, 0, 1, 1], [], []>} : vector<4x8xf32>, vector<8x16xf32>, vector<4x16xf32> -> vector<4x16xf32>
    %33 = vector.extract_strided_slice %32 {offsets = [0, 0], sizes = [2, 16], strides = [1, 1]} : vector<4x16xf32> to vector<2x16xf32>
    %34 = vector.shape_cast %33 : vector<2x16xf32> to vector<2x1x16xf32>
    %35 = vector.extract_strided_slice %32 {offsets = [2, 0], sizes = [2, 16], strides = [1, 1]} : vector<4x16xf32> to vector<2x16xf32>
    %36 = vector.shape_cast %35 : vector<2x16xf32> to vector<2x1x16xf32>
    %37 = vector.broadcast %34 : vector<2x1x16xf32> to vector<2x16x16xf32>
    %38 = arith.subf %14, %37 : vector<2x16x16xf32>
    %39 = vector.broadcast %36 : vector<2x1x16xf32> to vector<2x16x16xf32>
    %40 = arith.mulf %38, %39 : vector<2x16x16xf32>
    %c0_17 = arith.constant 0 : index
    %c0_18 = arith.constant 0 : index
    %41 = vector.load %arg4[%c0_17, %c0_18] : memref<1x16xf32, #tpu.memory_space<vmem>>, vector<1x16xf32>
    %42 = vector.shape_cast %41 : vector<1x16xf32> to vector<1x1x16xf32>
    %43 = vector.broadcast %42 : vector<1x1x16xf32> to vector<2x16x16xf32>
    %44 = arith.mulf %40, %43 : vector<2x16x16xf32>
    %c0_19 = arith.constant 0 : index
    %c0_20 = arith.constant 0 : index
    %45 = vector.load %arg5[%c0_19, %c0_20] : memref<1x16xf32, #tpu.memory_space<vmem>>, vector<1x16xf32>
    %46 = vector.shape_cast %45 : vector<1x16xf32> to vector<1x1x16xf32>
    %47 = vector.broadcast %46 : vector<1x1x16xf32> to vector<2x16x16xf32>
    %48 = arith.addf %44, %47 : vector<2x16x16xf32>
    %cst_21 = arith.constant 2.000000e+01 : f32
    %49 = vector.broadcast %cst_21 : f32 to vector<2x16x16xf32>
    %50 = arith.minimumf %48, %49 : vector<2x16x16xf32>
    %51 = math.exp %50 : vector<2x16x16xf32>
    %cst_22 = arith.constant 1.000000e+00 : f32
    %52 = vector.broadcast %cst_22 : f32 to vector<2x16x16xf32>
    %53 = arith.addf %52, %51 : vector<2x16x16xf32>
    %54 = arith.mulf %53, %53 : vector<2x16x16xf32>
    %cst_23 = arith.constant 1.000000e+00 : f32
    %55 = vector.broadcast %cst_23 : f32 to vector<2x16x16xf32>
    %56 = arith.addf %54, %55 : vector<2x16x16xf32>
    %57 = tpu.reciprocal %56 {approx = true} : vector<2x16x16xf32> -> vector<2x16x16xf32>
    %58 = arith.mulf %56, %57 : vector<2x16x16xf32>
    %cst_24 = arith.constant 2.000000e+00 : f32
    %59 = vector.broadcast %cst_24 : f32 to vector<2x16x16xf32>
    %60 = arith.subf %59, %58 : vector<2x16x16xf32>
    %61 = arith.mulf %57, %60 : vector<2x16x16xf32>
    %cst_25 = arith.constant 2.000000e+00 : f32
    %62 = vector.broadcast %cst_25 : f32 to vector<2x16x16xf32>
    %63 = arith.mulf %62, %48 : vector<2x16x16xf32>
    %64 = arith.mulf %63, %61 : vector<2x16x16xf32>
    %65 = arith.subf %48, %64 : vector<2x16x16xf32>
    %c0_26 = arith.constant 0 : index
    %c0_27 = arith.constant 0 : index
    %c0_28 = arith.constant 0 : index
    %66 = vector.load %arg8[%c0_26, %c0_27, %c0_28] : memref<2x16x16xf32, #tpu.memory_space<vmem>>, vector<2x16x16xf32>
    tpu.vector_store %arg8[%c0_26, %c0_27, %c0_28], %65 {strides = array<i32>} : memref<2x16x16xf32, #tpu.memory_space<vmem>>, vector<2x16x16xf32>,
    return
  }
  func.func @transform_0(%arg0: i32) -> (i32, i32, i32) {
    %c0_i32 = arith.constant 0 : i32
    %c0_i32_0 = arith.constant 0 : i32
    %c0_i32_1 = arith.constant 0 : i32
    return %arg0, %c0_i32, %c0_i32_0 : i32, i32, i32
  }
  func.func @transform_1(%arg0: i32) -> (i32, i32) {
    %c0_i32 = arith.constant 0 : i32
    %c0_i32_0 = arith.constant 0 : i32
    %c0_i32_1 = arith.constant 0 : i32
    return %c0_i32, %c0_i32_0 : i32, i32
  }
  func.func @transform_2(%arg0: i32) -> (i32, i32) {
    %c0_i32 = arith.constant 0 : i32
    %c0_i32_0 = arith.constant 0 : i32
    %c0_i32_1 = arith.constant 0 : i32
    return %c0_i32, %c0_i32_0 : i32, i32
  }
  func.func @transform_3(%arg0: i32) -> (i32, i32) {
    %c0_i32 = arith.constant 0 : i32
    %c0_i32_0 = arith.constant 0 : i32
    %c0_i32_1 = arith.constant 0 : i32
    return %c0_i32, %c0_i32_0 : i32, i32
  }
  func.func @transform_4(%arg0: i32) -> (i32, i32) {
    %c0_i32 = arith.constant 0 : i32
    %c0_i32_0 = arith.constant 0 : i32
    %c0_i32_1 = arith.constant 0 : i32
    return %c0_i32, %c0_i32_0 : i32, i32
  }
  func.func @transform_5(%arg0: i32) -> (i32, i32) {
    %c0_i32 = arith.constant 0 : i32
    %c0_i32_0 = arith.constant 0 : i32
    %c0_i32_1 = arith.constant 0 : i32
    return %c0_i32, %c0_i32_0 : i32, i32
  }
  func.func @transform_6(%arg0: i32) -> (i32, i32) {
    %c0_i32 = arith.constant 0 : i32
    %c0_i32_0 = arith.constant 0 : i32
    %c0_i32_1 = arith.constant 0 : i32
    return %c0_i32, %c0_i32_0 : i32, i32
  }
  func.func @transform_7(%arg0: i32) -> (i32, i32, i32) {
    %c0_i32 = arith.constant 0 : i32
    %c0_i32_0 = arith.constant 0 : i32
    %c0_i32_1 = arith.constant 0 : i32
    return %arg0, %c0_i32, %c0_i32_0 : i32, i32, i32
  }
}

</mosaic_0001>

<llo_original>
// kernel: tpu_custom_call.1
$region0: #{tpu_custom_call.1}
  #allocation0 [shape = 'u32[]', space=smem, size = 0x4, offset = 0x4, fixed_abs, tag = 'smem constant byte address 0x4 - core index']
  #allocation1 [shape = 'u32[144,128]{1,0:T(1,128)}', space=vmem, size = 0x12000, scoped, tag = 'internal scratch']
  %s0 = inlined_call_operand.vmem [shape: f32[2,4,16], index: 0, kind: input, shape index: {}]
  %s1 = inlined_call_operand.vmem [shape: f32[12,16], index: 1, kind: input, shape index: {}]
  %s2 = inlined_call_operand.vmem [shape: f32[1,16], index: 2, kind: input, shape index: {}]
  %s3 = inlined_call_operand.hbm [shape: f32[1,16], index: 3, kind: input, shape index: {}]
  %s4 = inlined_call_operand.hbm [shape: f32[1,16], index: 4, kind: input, shape index: {}]
  %s5 = inlined_call_operand.vmem [shape: f32[16,8], index: 5, kind: input, shape index: {}]
  %s6 = inlined_call_operand.hbm [shape: f32[8,16], index: 6, kind: input, shape index: {}]
  %s7 = inlined_call_operand.hbm [shape: f32[2,16,16], index: 7, kind: output, shape index: {}]
  %s8 = sld [smem:[#allocation0]]
  $region50: #{tpu_custom_call.1} parent=0
    _
  %s10 = ssub.s32 1, %s8
  %s11 = scalar_select 0, %s10, %s8
  $region1: #{tpu_custom_call.1} parent=0
    #allocation2 [shape = 'u8[512]{0}', space=vmem, size = 0x400, scoped, tag = 'input window, operand 3, single buffered']
    #allocation3 [shape = 's32[1]{0}', space=sflag, size = 0x4, scoped, tag = 'scoped memory for tpu_custom_call.1']
    #allocation4 [shape = 's32[1]{0}', space=sflag, size = 0x4, scoped, tag = 'scoped memory for tpu_custom_call.1']
    #allocation5 [shape = 'u8[512]{0}', space=vmem, size = 0x400, scoped, tag = 'input window, operand 4, single buffered']
    #allocation6 [shape = 's32[1]{0}', space=sflag, size = 0x4, scoped, tag = 'scoped memory for tpu_custom_call.1']
    #allocation7 [shape = 'u8[4096]{0}', space=vmem, size = 0x1000, scoped, tag = 'input window, operand 6, single buffered']
    #allocation8 [shape = 'u8[16384]{0}', space=vmem, size = 0x4000, scoped, tag = 'output window, operand 0, single buffered']
    %12 = vsyncpa [#allocation3], 0
    %13 = vsyncpa [#allocation6], 0
    %14 = vsyncpa [#allocation4], 0
    // Predicated region
    $region2: #{tpu_custom_call.1} parent=1 // pred_check
      _
    $region3: #{tpu_custom_call.1} parent=1 // pred_check_branch
      %16 = sbr.rel (0) target = $region5
    $region4: #{tpu_custom_call.1} parent=1 // pred_region
      _
    $region5: #{tpu_custom_call.1} parent=1 // pred_fallthru
      _
    // Predicated region
    $region6: #{tpu_custom_call.1} parent=1 // pred_check
      _
    $region7: #{tpu_custom_call.1} parent=1 // pred_check_branch
      %18 = sbr.rel (0) target = $region9
    $region8: #{tpu_custom_call.1} parent=1 // pred_region
      _
    $region9: #{tpu_custom_call.1} parent=1 // pred_fallthru
      _
    // Predicated region
    $region10: #{tpu_custom_call.1} parent=1 // pred_check
      _
    $region11: #{tpu_custom_call.1} parent=1 // pred_check_branch
      %20 = sbr.rel (0) target = $region13
    $region12: #{tpu_custom_call.1} parent=1 // pred_region
      _
    $region13: #{tpu_custom_call.1} parent=1 // pred_fallthru
      _
    // Predicated region
    $region14: #{tpu_custom_call.1} parent=1 // pred_check
      _
    $region15: #{tpu_custom_call.1} parent=1 // pred_check_branch
      %22 = sbr.rel (0) target = $region17
    $region16: #{tpu_custom_call.1} parent=1 // pred_region
      %s24 = ssub.s32 16, 16
      %25 = vsyncadd [#allocation3], %s24
      %s27 = sshll.u32 [#allocation2], 4
      %s28 = int_to_ptr.vmem [resolvable:$true] %s27
      %30 = dma.hbm_to_vmem [thread:$0]  %s3, 16, %s28, [#allocation3]
    $region17: #{tpu_custom_call.1} parent=1 // pred_fallthru
      _
    // Predicated region
    $region18: #{tpu_custom_call.1} parent=1 // pred_check
      _
    $region19: #{tpu_custom_call.1} parent=1 // pred_check_branch
      %32 = sbr.rel (0) target = $region21
    $region20: #{tpu_custom_call.1} parent=1 // pred_region
      %s34 = ssub.s32 16, 16
      %35 = vsyncadd [#allocation6], %s34
      %s37 = sshll.u32 [#allocation5], 4
      %s38 = int_to_ptr.vmem [resolvable:$true] %s37
      %40 = dma.hbm_to_vmem [thread:$0]  %s4, 16, %s38, [#allocation6]
    $region21: #{tpu_custom_call.1} parent=1 // pred_fallthru
      _
    // Predicated region
    $region22: #{tpu_custom_call.1} parent=1 // pred_check
      _
    $region23: #{tpu_custom_call.1} parent=1 // pred_check_branch
      %42 = sbr.rel (0) target = $region25
    $region24: #{tpu_custom_call.1} parent=1 // pred_region
      _
    $region25: #{tpu_custom_call.1} parent=1 // pred_fallthru
      _
    // Predicated region
    $region26: #{tpu_custom_call.1} parent=1 // pred_check
      _
    $region27: #{tpu_custom_call.1} parent=1 // pred_check_branch
      %44 = sbr.rel (0) target = $region29
    $region28: #{tpu_custom_call.1} parent=1 // pred_region
      %s46 = ssub.s32 128, 128
      %47 = vsyncadd [#allocation6], %s46
      %s49 = sshll.u32 [#allocation7], 4
      %s50 = int_to_ptr.vmem [resolvable:$true] %s49
      %52 = dma.hbm_to_vmem [thread:$0]  %s6, 128, %s50, [#allocation6]
    $region29: #{tpu_custom_call.1} parent=1 // pred_fallthru
      _
    // Predicated region
    $region30: #{tpu_custom_call.1} parent=1 // pred_check
      _
    $region31: #{tpu_custom_call.1} parent=1 // pred_check_branch
      %54 = sbr.rel (0) target = $region33
    $region32: #{tpu_custom_call.1} parent=1 // pred_region
      %55 = dma.done [#allocation3], 16
    $region33: #{tpu_custom_call.1} parent=1 // pred_fallthru
      _
    // Predicated region
    $region34: #{tpu_custom_call.1} parent=1 // pred_check
      _
    $region35: #{tpu_custom_call.1} parent=1 // pred_check_branch
      %57 = sbr.rel (0) target = $region37
    $region36: #{tpu_custom_call.1} parent=1 // pred_region
      %58 = dma.done [#allocation6], 16
    $region37: #{tpu_custom_call.1} parent=1 // pred_fallthru
      _
    // Predicated region
    $region38: #{tpu_custom_call.1} parent=1 // pred_check
      _
    $region39: #{tpu_custom_call.1} parent=1 // pred_check_branch
      %60 = sbr.rel (0) target = $region41
    $region40: #{tpu_custom_call.1} parent=1 // pred_region
      %61 = dma.done [#allocation6], 128
    $region41: #{tpu_custom_call.1} parent=1 // pred_fallthru
      _
    %v62 = vld [vmem:[%s0] sm:$0xf]
    %v63 = vld [vmem:[%s0 + $0x4] sm:$0xf]
    %64 = vxpose.xlu0.b32.start [1/16] %v62, 128
    %65 = vxpose.xlu0.b32.cont [2/16] 0.0, 128
    %66 = vxpose.xlu0.b32.cont [3/16] 0.0, 128
    %67 = vxpose.xlu0.b32.cont [4/16] 0.0, 128
    %68 = vxpose.xlu0.b32.cont [5/16] 0.0, 128
    %69 = vxpose.xlu0.b32.cont [6/16] 0.0, 128
    %70 = vxpose.xlu0.b32.cont [7/16] 0.0, 128
    %71 = vxpose.xlu0.b32.cont [8/16] 0.0, 128
    %72 = vxpose.xlu0.b32.cont [9/16] 0.0, 128
    %73 = vxpose.xlu0.b32.cont [10/16] 0.0, 128
    %74 = vxpose.xlu0.b32.cont [11/16] 0.0, 128
    %75 = vxpose.xlu0.b32.cont [12/16] 0.0, 128
    %76 = vxpose.xlu0.b32.cont [13/16] 0.0, 128
    %77 = vxpose.xlu0.b32.cont [14/16] 0.0, 128
    %78 = vxpose.xlu0.b32.cont [15/16] 0.0, 128
    %79 = vxpose.xlu0.b32.end [16/16] 0.0, 128
    %v80 = vpop.trf.xlu0
    %v81 = vpop.trf.xlu0
    %v82 = vpop.trf.xlu0
    %v83 = vpop.trf.xlu0
    %v84 = vpop.trf.xlu0
    %v85 = vpop.trf.xlu0
    %v86 = vpop.trf.xlu0
    %v87 = vpop.trf.xlu0
    %v88 = vpop.trf.xlu0
    %v89 = vpop.trf.xlu0
    %v90 = vpop.trf.xlu0
    %v91 = vpop.trf.xlu0
    %v92 = vpop.trf.xlu0
    %v93 = vpop.trf.xlu0
    %v94 = vpop.trf.xlu0
    %v95 = vpop.trf.xlu0
    %96 = vxpose.xlu0.b32.start [1/16] %v63, 128
    %97 = vxpose.xlu0.b32.cont [2/16] 0.0, 128
    %98 = vxpose.xlu0.b32.cont [3/16] 0.0, 128
    %99 = vxpose.xlu0.b32.cont [4/16] 0.0, 128
    %100 = vxpose.xlu0.b32.cont [5/16] 0.0, 128
    %101 = vxpose.xlu0.b32.cont [6/16] 0.0, 128
    %102 = vxpose.xlu0.b32.cont [7/16] 0.0, 128
    %103 = vxpose.xlu0.b32.cont [8/16] 0.0, 128
    %104 = vxpose.xlu0.b32.cont [9/16] 0.0, 128
    %105 = vxpose.xlu0.b32.cont [10/16] 0.0, 128
    %106 = vxpose.xlu0.b32.cont [11/16] 0.0, 128
    %107 = vxpose.xlu0.b32.cont [12/16] 0.0, 128
    %108 = vxpose.xlu0.b32.cont [13/16] 0.0, 128
    %109 = vxpose.xlu0.b32.cont [14/16] 0.0, 128
    %110 = vxpose.xlu0.b32.cont [15/16] 0.0, 128
    %111 = vxpose.xlu0.b32.end [16/16] 0.0, 128
    %v112 = vpop.trf.xlu0
    %v113 = vpop.trf.xlu0
    %v114 = vpop.trf.xlu0
    %v115 = vpop.trf.xlu0
    %v116 = vpop.trf.xlu0
    %v117 = vpop.trf.xlu0
    %v118 = vpop.trf.xlu0
    %v119 = vpop.trf.xlu0
    %v120 = vpop.trf.xlu0
    %v121 = vpop.trf.xlu0
    %v122 = vpop.trf.xlu0
    %v123 = vpop.trf.xlu0
    %v124 = vpop.trf.xlu0
    %v125 = vpop.trf.xlu0
    %v126 = vpop.trf.xlu0
    %v127 = vpop.trf.xlu0
    %vm132 = vcmask 1040384
    %v133 = vrot.slane %v80, 7
    %v134 = vrot.slane %v81, 7
    %v135 = vsel %vm132, %v133, %v134
    %v136 = vrot.slane %v112, 7
    %v137 = vrot.slane %v113, 7
    %v138 = vsel %vm132, %v136, %v137
    %v145 = vsel %vm132, 0.0, %v133
    %v146 = vsel %vm132, 0.0, %v136
    %v147 = vsel %vm132, %v134, 0.0
    %v148 = vsel %vm132, %v137, 0.0
    %vm153 = vcmask 1046528
    %v154 = vrot.slane %v145, 1
    %v155 = vrot.slane %v135, 1
    %v156 = vsel %vm153, %v154, %v155
    %v157 = vrot.slane %v147, 1
    %v158 = vsel %vm153, %v155, %v157
    %v159 = vrot.slane %v146, 1
    %v160 = vrot.slane %v138, 1
    %v161 = vsel %vm153, %v159, %v160
    %v162 = vrot.slane %v148, 1
    %v163 = vsel %vm153, %v160, %v162
    %164 = vrot.lane.b32.xlu0 %v156, 4
    %v165 = vpop.permute.xlu0 %164
    %166 = vrot.lane.b32.xlu0 %v158, 4
    %v167 = vpop.permute.xlu0 %166
    %168 = vrot.lane.b32.xlu0 %v161, 4
    %v169 = vpop.permute.xlu0 %168
    %170 = vrot.lane.b32.xlu0 %v163, 4
    %v171 = vpop.permute.xlu0 %170
    %vm176 = vcmask 1045504
    %v177 = vrot.slane %v145, 2
    %v178 = vrot.slane %v135, 2
    %v179 = vsel %vm176, %v177, %v178
    %v180 = vrot.slane %v147, 2
    %v181 = vsel %vm176, %v178, %v180
    %v182 = vrot.slane %v146, 2
    %v183 = vrot.slane %v138, 2
    %v184 = vsel %vm176, %v182, %v183
    %v185 = vrot.slane %v148, 2
    %v186 = vsel %vm176, %v183, %v185
    %187 = vrot.lane.b32.xlu0 %v179, 8
    %v188 = vpop.permute.xlu0 %187
    %189 = vrot.lane.b32.xlu0 %v181, 8
    %v190 = vpop.permute.xlu0 %189
    %191 = vrot.lane.b32.xlu0 %v184, 8
    %v192 = vpop.permute.xlu0 %191
    %193 = vrot.lane.b32.xlu0 %v186, 8
    %v194 = vpop.permute.xlu0 %193
    %vm199 = vcmask 31744
    %v200 = vsel %vm199, %v145, %v165
    %v201 = vsel %vm199, %v135, %v167
    %v202 = vsel %vm199, %v146, %v169
    %v203 = vsel %vm199, %v138, %v171
    %vm204 = vcmask 64512
    %v205 = vsel %vm204, %v200, %v188
    %v206 = vsel %vm204, %v201, %v190
    %v207 = vsel %vm204, %v202, %v192
    %v208 = vsel %vm204, %v203, %v194
    %v209 = vld [vmem:[%s1] sm:$0xff]
    %v210 = vld [vmem:[%s1 + $0x8] sm:$0xf]
    %v211 = vld [vmem:[%s2] sm:$0x1]
    %v213 = vlaneseq
    %v214 = vshrl.u32 %v213, 7
    %v215 = vsub.s32 0, %v214
    %v216 = vrot.slane %v211, %v215
    %vm218 = vcmask 97280
    %v220 = vsel %vm218, %v205, 0
    %v223 = vsel %vm218, %v206, 0
    %v226 = vsel %vm218, %v207, 0
    %v229 = vsel %vm218, %v208, 0
    %vm231 = vcmask 1043456
    %v233 = vsel %vm231, %v210, 0
    %235 = vmatprep.subr.mxu0 0.0
    %236 = vmatpush1.msra.mxu0 0.0
    %237 = vmatprep.subr.mxu0 0.0
    %238 = vmatpush1.msra.mxu0 0.0
    %239 = vmatprep.subr.mxu0 0.0
    %240 = vmatpush1.msra.mxu0 0.0
    %241 = vmatprep.subr.mxu0 0.0
    %242 = vmatpush1.msra.mxu0 0.0
    %243 = vmatprep.subr.mxu0 0.0
    %244 = vmatpush1.msra.mxu0 0.0
    %245 = vmatprep.subr.mxu0 0.0
    %246 = vmatpush1.msra.mxu0 0.0
    %247 = vmatprep.subr.mxu0 0.0
    %248 = vmatpush1.msra.mxu0 0.0
    %249 = vmatprep.subr.mxu0 0.0
    %250 = vmatpush1.msra.mxu0 0.0
    %251 = vmatprep.subr.mxu0 0.0
    %252 = vmatpush1.msra.mxu0 0.0
    %253 = vmatprep.subr.mxu0 0.0
    %254 = vmatpush1.msra.mxu0 0.0
    %255 = vmatprep.subr.mxu0 0.0
    %256 = vmatpush1.msra.mxu0 0.0
    %257 = vmatprep.subr.mxu0 0.0
    %258 = vmatpush1.msra.mxu0 0.0
    %259 = vmatprep.subr.mxu0 0.0
    %260 = vmatpush1.msra.mxu0 0.0
    %261 = vmatprep.subr.mxu0 0.0
    %262 = vmatpush1.msra.mxu0 0.0
    %263 = vmatprep.subr.mxu0 0.0
    %264 = vmatpush1.msra.mxu0 %v233
    %265 = vmatprep.subr.mxu0 0.0
    %266 = vmatpush1.msra.mxu0 %v209
    %267 = vmatprep.subr.mxu0 0.0
    %268 = vmatpush2.msra.mxu0 0.0
    %269 = vmatprep.subr.mxu0 0.0
    %270 = vmatpush2.msra.mxu0 0.0
    %271 = vmatprep.subr.mxu0 0.0
    %272 = vmatpush2.msra.mxu0 0.0
    %273 = vmatprep.subr.mxu0 0.0
    %274 = vmatpush2.msra.mxu0 0.0
    %275 = vmatprep.subr.mxu0 0.0
    %276 = vmatpush2.msra.mxu0 0.0
    %277 = vmatprep.subr.mxu0 0.0
    %278 = vmatpush2.msra.mxu0 0.0
    %279 = vmatprep.subr.mxu0 0.0
    %280 = vmatpush2.msra.mxu0 0.0
    %281 = vmatprep.subr.mxu0 0.0
    %282 = vmatpush2.msra.mxu0 0.0
    %283 = vmatprep.subr.mxu0 0.0
    %284 = vmatpush2.msra.mxu0 0.0
    %285 = vmatprep.subr.mxu0 0.0
    %286 = vmatpush2.msra.mxu0 0.0
    %287 = vmatprep.subr.mxu0 0.0
    %288 = vmatpush2.msra.mxu0 0.0
    %289 = vmatprep.subr.mxu0 0.0
    %290 = vmatpush2.msra.mxu0 0.0
    %291 = vmatprep.subr.mxu0 0.0
    %292 = vmatpush2.msra.mxu0 0.0
    %293 = vmatprep.subr.mxu0 0.0
    %294 = vmatpush2.msra.mxu0 0.0
    %295 = vmatprep.subr.mxu0 0.0
    %296 = vmatpush2.msra.mxu0 0.0
    %297 = vmatprep.subr.mxu0 0.0
    %298 = vmatpush2.msra.mxu0 0.0
    %299 = vmatprep.mubr.f32.mxu0 0.0
    %300 = vmatmul.mubr.f32.gmra.mxu0 %v220
    %v301 = vpop.f32.mrf.mxu0
    %v302 = vadd.f32 %v216, %v301
    %v303 = vpop.f32.mrf.mxu0
    %304 = vmatprep.mubr.f32.mxu0 0.0
    %305 = vmatmul.mubr.f32.gmra.mxu0 %v223
    %v306 = vpop.f32.mrf.mxu0
    %v307 = vadd.f32 %v216, %v306
    %v308 = vpop.f32.mrf.mxu0
    %309 = vmatprep.mubr.f32.mxu0 0.0
    %310 = vmatmul.mubr.f32.gmra.mxu0 %v226
    %v311 = vpop.f32.mrf.mxu0
    %v312 = vadd.f32 %v216, %v311
    %v313 = vpop.f32.mrf.mxu0
    %314 = vmatprep.mubr.f32.mxu0 0.0
    %315 = vmatmul.mubr.f32.gmra.mxu0 %v229
    %v316 = vpop.f32.mrf.mxu0
    %v317 = vadd.f32 %v216, %v316
    %v318 = vpop.f32.mrf.mxu0
    %319 = vdwg.mxu0
    %v320 = vld [vmem:[%s5] sm:$0xff]
    %v321 = vld [vmem:[%s5 + $0x8] sm:$0xff]
    %v322 = vld [vmem:[#allocation7] sm:$0xff]
    %vm323 = vcmask 130048
    %v324 = vsel %vm323, %v302, 0.0
    %v325 = vsel %vm323, %v307, 0.0
    %v326 = vadd.f32 %v324, %v325
    %v327 = vrot.slane %v326, 4
    %v328 = vadd.f32 %v326, %v327
    %v329 = vrot.slane %v328, 2
    %v330 = vadd.f32 %v328, %v329
    %v331 = vrot.slane %v330, 1
    %v332 = vadd.f32 %v330, %v331
    %v333 = vsel %vm323, %v312, 0.0
    %v334 = vsel %vm323, %v317, 0.0
    %v335 = vadd.f32 %v333, %v334
    %v336 = vrot.slane %v335, 4
    %v337 = vadd.f32 %v335, %v336
    %v338 = vrot.slane %v337, 2
    %v339 = vadd.f32 %v337, %v338
    %v340 = vrot.slane %v339, 1
    %v341 = vadd.f32 %v339, %v340
    %v342 = vmul.f32 %v302, %v302
    %v343 = vmul.f32 %v307, %v307
    %v344 = vmul.f32 %v312, %v312
    %v345 = vmul.f32 %v317, %v317
    %v346 = vsel %vm323, %v342, 0.0
    %v347 = vsel %vm323, %v343, 0.0
    %v348 = vadd.f32 %v346, %v347
    %v349 = vrot.slane %v348, 4
    %v350 = vadd.f32 %v348, %v349
    %v351 = vrot.slane %v350, 2
    %v352 = vadd.f32 %v350, %v351
    %v353 = vrot.slane %v352, 1
    %v354 = vadd.f32 %v352, %v353
    %v355 = vsel %vm323, %v344, 0.0
    %v356 = vsel %vm323, %v345, 0.0
    %v357 = vadd.f32 %v355, %v356
    %v358 = vrot.slane %v357, 4
    %v359 = vadd.f32 %v357, %v358
    %v360 = vrot.slane %v359, 2
    %v361 = vadd.f32 %v359, %v360
    %v362 = vrot.slane %v361, 1
    %v363 = vadd.f32 %v361, %v362
    %vm366 = vcmask 1041409
    %v367 = vsel %vm366, %v341, %v332
    %vm371 = vcmask 1043459
    %v372 = vsel %vm371, %v363, %v354
    %vm374 = vcmask 1041408
    %v375 = vsel %vm374, %v367, %v372
    %v377 = vsel %vm323, %v375, 0
    %379 = vmatprep.subr.mxu0 0.0
    %380 = vmatpush1.msra.mxu0 0.0
    %381 = vmatprep.subr.mxu0 0.0
    %382 = vmatpush1.msra.mxu0 0.0
    %383 = vmatprep.subr.mxu0 0.0
    %384 = vmatpush1.msra.mxu0 0.0
    %385 = vmatprep.subr.mxu0 0.0
    %386 = vmatpush1.msra.mxu0 0.0
    %387 = vmatprep.subr.mxu0 0.0
    %388 = vmatpush1.msra.mxu0 0.0
    %389 = vmatprep.subr.mxu0 0.0
    %390 = vmatpush1.msra.mxu0 0.0
    %391 = vmatprep.subr.mxu0 0.0
    %392 = vmatpush1.msra.mxu0 0.0
    %393 = vmatprep.subr.mxu0 0.0
    %394 = vmatpush1.msra.mxu0 0.0
    %395 = vmatprep.subr.mxu0 0.0
    %396 = vmatpush1.msra.mxu0 0.0
    %397 = vmatprep.subr.mxu0 0.0
    %398 = vmatpush1.msra.mxu0 0.0
    %399 = vmatprep.subr.mxu0 0.0
    %400 = vmatpush1.msra.mxu0 0.0
    %401 = vmatprep.subr.mxu0 0.0
    %402 = vmatpush1.msra.mxu0 0.0
    %403 = vmatprep.subr.mxu0 0.0
    %404 = vmatpush1.msra.mxu0 0.0
    %405 = vmatprep.subr.mxu0 0.0
    %406 = vmatpush1.msra.mxu0 0.0
    %407 = vmatprep.subr.mxu0 0.0
    %408 = vmatpush1.msra.mxu0 %v321
    %409 = vmatprep.subr.mxu0 0.0
    %410 = vmatpush1.msra.mxu0 %v320
    %411 = vmatprep.subr.mxu0 0.0
    %412 = vmatpush2.msra.mxu0 0.0
    %413 = vmatprep.subr.mxu0 0.0
    %414 = vmatpush2.msra.mxu0 0.0
    %415 = vmatprep.subr.mxu0 0.0
    %416 = vmatpush2.msra.mxu0 0.0
    %417 = vmatprep.subr.mxu0 0.0
    %418 = vmatpush2.msra.mxu0 0.0
    %419 = vmatprep.subr.mxu0 0.0
    %420 = vmatpush2.msra.mxu0 0.0
    %421 = vmatprep.subr.mxu0 0.0
    %422 = vmatpush2.msra.mxu0 0.0
    %423 = vmatprep.subr.mxu0 0.0
    %424 = vmatpush2.msra.mxu0 0.0
    %425 = vmatprep.subr.mxu0 0.0
    %426 = vmatpush2.msra.mxu0 0.0
    %427 = vmatprep.subr.mxu0 0.0
    %428 = vmatpush2.msra.mxu0 0.0
    %429 = vmatprep.subr.mxu0 0.0
    %430 = vmatpush2.msra.mxu0 0.0
    %431 = vmatprep.subr.mxu0 0.0
    %432 = vmatpush2.msra.mxu0 0.0
    %433 = vmatprep.subr.mxu0 0.0
    %434 = vmatpush2.msra.mxu0 0.0
    %435 = vmatprep.subr.mxu0 0.0
    %436 = vmatpush2.msra.mxu0 0.0
    %437 = vmatprep.subr.mxu0 0.0
    %438 = vmatpush2.msra.mxu0 0.0
    %439 = vmatprep.subr.mxu0 0.0
    %440 = vmatpush2.msra.mxu0 0.0
    %441 = vmatprep.subr.mxu0 0.0
    %442 = vmatpush2.msra.mxu0 0.0
    %443 = vmatprep.mubr.f32.mxu0 0.0
    %444 = vmatmul.mubr.f32.gmra.mxu0 %v377
    %v445 = vpop.f32.mrf.mxu0
    %v446 = vadd.f32 0.0, %v445
    %v447 = vpop.f32.mrf.mxu0
    %448 = vdwg.mxu0
    %v449 = vmul.f32 %v446, 0.03125
    %v450 = vmul.f32 %v449, %v449
    %v452 = vrot.slane %v450, 6
    %v454 = vsub.f32 %v449, %v452
    %v455 = vadd.f32 %v454, 1e-05
    %v456 = vrsqrt.pop %v455
    %v457 = vsel %vm374, %v449, %v456
    %v459 = vsel %vm204, %v457, 0
    %461 = vmatprep.subr.mxu0 0.0
    %462 = vmatpush1.msra.mxu0 0.0
    %463 = vmatprep.subr.mxu0 0.0
    %464 = vmatpush1.msra.mxu0 0.0
    %465 = vmatprep.subr.mxu0 0.0
    %466 = vmatpush1.msra.mxu0 0.0
    %467 = vmatprep.subr.mxu0 0.0
    %468 = vmatpush1.msra.mxu0 0.0
    %469 = vmatprep.subr.mxu0 0.0
    %470 = vmatpush1.msra.mxu0 0.0
    %471 = vmatprep.subr.mxu0 0.0
    %472 = vmatpush1.msra.mxu0 0.0
    %473 = vmatprep.subr.mxu0 0.0
    %474 = vmatpush1.msra.mxu0 0.0
    %475 = vmatprep.subr.mxu0 0.0
    %476 = vmatpush1.msra.mxu0 0.0
    %477 = vmatprep.subr.mxu0 0.0
    %478 = vmatpush1.msra.mxu0 0.0
    %479 = vmatprep.subr.mxu0 0.0
    %480 = vmatpush1.msra.mxu0 0.0
    %481 = vmatprep.subr.mxu0 0.0
    %482 = vmatpush1.msra.mxu0 0.0
    %483 = vmatprep.subr.mxu0 0.0
    %484 = vmatpush1.msra.mxu0 0.0
    %485 = vmatprep.subr.mxu0 0.0
    %486 = vmatpush1.msra.mxu0 0.0
    %487 = vmatprep.subr.mxu0 0.0
    %488 = vmatpush1.msra.mxu0 0.0
    %489 = vmatprep.subr.mxu0 0.0
    %490 = vmatpush1.msra.mxu0 0.0
    %491 = vmatprep.subr.mxu0 0.0
    %492 = vmatpush1.msra.mxu0 %v322
    %493 = vmatprep.subr.mxu0 0.0
    %494 = vmatpush2.msra.mxu0 0.0
    %495 = vmatprep.subr.mxu0 0.0
    %496 = vmatpush2.msra.mxu0 0.0
    %497 = vmatprep.subr.mxu0 0.0
    %498 = vmatpush2.msra.mxu0 0.0
    %499 = vmatprep.subr.mxu0 0.0
    %500 = vmatpush2.msra.mxu0 0.0
    %501 = vmatprep.subr.mxu0 0.0
    %502 = vmatpush2.msra.mxu0 0.0
    %503 = vmatprep.subr.mxu0 0.0
    %504 = vmatpush2.msra.mxu0 0.0
    %505 = vmatprep.subr.mxu0 0.0
    %506 = vmatpush2.msra.mxu0 0.0
    %507 = vmatprep.subr.mxu0 0.0
    %508 = vmatpush2.msra.mxu0 0.0
    %509 = vmatprep.subr.mxu0 0.0
    %510 = vmatpush2.msra.mxu0 0.0
    %511 = vmatprep.subr.mxu0 0.0
    %512 = vmatpush2.msra.mxu0 0.0
    %513 = vmatprep.subr.mxu0 0.0
    %514 = vmatpush2.msra.mxu0 0.0
    %515 = vmatprep.subr.mxu0 0.0
    %516 = vmatpush2.msra.mxu0 0.0
    %517 = vmatprep.subr.mxu0 0.0
    %518 = vmatpush2.msra.mxu0 0.0
    %519 = vmatprep.subr.mxu0 0.0
    %520 = vmatpush2.msra.mxu0 0.0
    %521 = vmatprep.subr.mxu0 0.0
    %522 = vmatpush2.msra.mxu0 0.0
    %523 = vmatprep.subr.mxu0 0.0
    %524 = vmatpush2.msra.mxu0 0.0
    %525 = vmatprep.mubr.f32.mxu0 0.0
    %526 = vmatmul.mubr.f32.gmra.mxu0 %v459
    %v527 = vpop.f32.mrf.mxu0
    %v528 = vadd.f32 0.0, %v527
    %v529 = vpop.f32.mrf.mxu0
    %530 = vdwg.mxu0
    %v533 = vunpack.c.l.s4 1966171168
    %v534 = vunpack.c.0.s8 %v533
    %v535 = vlaneseq
    %v536 = vshrl.u32 %v535, 7
    %v537 = vsub.s32 %v534, %v536
    %v538 = vrot.slane %v528, %v537
    %v539 = vcombine.high %v538, %v538
    %v541 = vunpack.c.l.s4 1966171168
    %v542 = vunpack.c.0.s8 %v541
    %v543 = vlaneseq
    %v544 = vshrl.u32 %v543, 7
    %v545 = vsub.s32 %v542, %v544
    %v546 = vrot.slane %v538, %v545
    %v548 = vunpack.c.l.s4 1966171168
    %v549 = vunpack.c.0.s8 %v548
    %v550 = vlaneseq
    %v551 = vshrl.u32 %v550, 7
    %v552 = vsub.s32 %v549, %v551
    %v553 = vrot.slane %v539, %v552
    %v554 = vcombine.high %v546, %v546
    %v555 = vcombine.high %v553, %v553
    %v556 = vlaneseq
    %v557 = vshrl.u32 %v556, 7
    %v558 = vsub.s32 0, %v557
    %v559 = vrot.slane %v546, %v558
    %v560 = vlaneseq
    %v561 = vshrl.u32 %v560, 7
    %v562 = vsub.s32 0, %v561
    %v563 = vrot.slane %v553, %v562
    %v566 = vsub.f32 %v302, %v559
    %v567 = vsub.f32 %v307, %v559
    %v568 = vsub.f32 %v312, %v563
    %v569 = vsub.f32 %v317, %v563
    %v570 = vlaneseq
    %v571 = vshrl.u32 %v570, 7
    %v572 = vsub.s32 0, %v571
    %v573 = vrot.slane %v554, %v572
    %v574 = vlaneseq
    %v575 = vshrl.u32 %v574, 7
    %v576 = vsub.s32 0, %v575
    %v577 = vrot.slane %v555, %v576
    %v580 = vmul.f32 %v566, %v573
    %v581 = vmul.f32 %v567, %v573
    %v582 = vmul.f32 %v568, %v577
    %v583 = vmul.f32 %v569, %v577
    %v584 = vld [vmem:[#allocation2] sm:$0x1]
    %v586 = vlaneseq
    %v587 = vshrl.u32 %v586, 7
    %v588 = vsub.s32 0, %v587
    %v589 = vrot.slane %v584, %v588
    %v591 = vmul.f32 %v580, %v589
    %v592 = vmul.f32 %v581, %v589
    %v593 = vmul.f32 %v582, %v589
    %v594 = vmul.f32 %v583, %v589
    %v595 = vld [vmem:[#allocation5] sm:$0x1]
    %v597 = vlaneseq
    %v598 = vshrl.u32 %v597, 7
    %v599 = vsub.s32 0, %v598
    %v600 = vrot.slane %v595, %v599
    %v602 = vadd.f32 %v591, %v600
    %v603 = vadd.f32 %v592, %v600
    %v604 = vadd.f32 %v593, %v600
    %v605 = vadd.f32 %v594, %v600
    %v606 = vmin.f32 %v602, 20.0
    %v607 = vmin.f32 %v603, 20.0
    %v608 = vmin.f32 %v604, 20.0
    %v609 = vmin.f32 %v605, 20.0
    %v610 = vmul.f32 %v606, 1.442695
    %v611 = vpow.pop %v610
    %v612 = vmul.f32 %v607, 1.442695
    %v613 = vpow.pop %v612
    %v614 = vmul.f32 %v608, 1.442695
    %v615 = vpow.pop %v614
    %v616 = vmul.f32 %v609, 1.442695
    %v617 = vpow.pop %v616
    %v618 = vadd.f32 %v611, 1.0
    %v619 = vadd.f32 %v613, 1.0
    %v620 = vadd.f32 %v615, 1.0
    %v621 = vadd.f32 %v617, 1.0
    %v622 = vmul.f32 %v618, %v618
    %v623 = vmul.f32 %v619, %v619
    %v624 = vmul.f32 %v620, %v620
    %v625 = vmul.f32 %v621, %v621
    %v626 = vadd.f32 %v622, 1.0
    %v627 = vadd.f32 %v623, 1.0
    %v628 = vadd.f32 %v624, 1.0
    %v629 = vadd.f32 %v625, 1.0
    %v630 = vrcp.pop %v626
    %v631 = vrcp.pop %v627
    %v632 = vrcp.pop %v628
    %v633 = vrcp.pop %v629
    %v634 = vmul.f32 %v626, %v630
    %v635 = vmul.f32 %v627, %v631
    %v636 = vmul.f32 %v628, %v632
    %v637 = vmul.f32 %v629, %v633
    %v638 = vsub.f32 2.0, %v634
    %v639 = vsub.f32 2.0, %v635
    %v640 = vsub.f32 2.0, %v636
    %v641 = vsub.f32 2.0, %v637
    %v642 = vmul.f32 %v630, %v638
    %v643 = vmul.f32 %v631, %v639
    %v644 = vmul.f32 %v632, %v640
    %v645 = vmul.f32 %v633, %v641
    %v646 = vmul.f32 %v602, 2.0
    %v647 = vmul.f32 %v603, 2.0
    %v648 = vmul.f32 %v604, 2.0
    %v649 = vmul.f32 %v605, 2.0
    %v650 = vmul.f32 %v646, %v642
    %v651 = vmul.f32 %v647, %v643
    %v652 = vmul.f32 %v648, %v644
    %v653 = vmul.f32 %v649, %v645
    %v654 = vsub.f32 %v602, %v650
    %v655 = vsub.f32 %v603, %v651
    %v656 = vsub.f32 %v604, %v652
    %v657 = vsub.f32 %v605, %v653
    %658 = vst.msk [vmem:[#allocation8] sm:$0xff] %vm323, %v654
    %659 = vst.msk [vmem:[#allocation8 + $0x8] sm:$0xff] %vm323, %v655
    %660 = vst.msk [vmem:[#allocation8 + $0x10] sm:$0xff] %vm323, %v656
    %661 = vst.msk [vmem:[#allocation8 + $0x18] sm:$0xff] %vm323, %v657
    // Predicated region
    $region42: #{tpu_custom_call.1} parent=1 // pred_check
      _
    $region43: #{tpu_custom_call.1} parent=1 // pred_check_branch
      %663 = sbr.rel (0) target = $region45
    $region44: #{tpu_custom_call.1} parent=1 // pred_region
      %s665 = ssub.s32 512, 512
      %666 = vsyncadd [#allocation4], %s665
      %s667 = sshll.u32 [#allocation8], 4
      %s668 = int_to_ptr.vmem [resolvable:$true] %s667
      %673 = dma.vmem_to_hbm [thread:$0]  %s668, 512, %s7, [#allocation4], 128, 128, 8
    $region45: #{tpu_custom_call.1} parent=1 // pred_fallthru
      _
    // Predicated region
    $region46: #{tpu_custom_call.1} parent=1 // pred_check
      _
    $region47: #{tpu_custom_call.1} parent=1 // pred_check_branch
      %675 = sbr.rel (0) target = $region49
    $region48: #{tpu_custom_call.1} parent=1 // pred_region
      %676 = dma.done [#allocation4], 512
    $region49: #{tpu_custom_call.1} parent=1 // pred_fallthru
      _
    %677 = vsyncpa [#allocation3], 1
    %678 = vsyncpa [#allocation6], 1
    %679 = vsyncpa [#allocation4], 1

</llo_original>
